<compile_context>
chip_gen: v5e
topology: v5e:2x2
jax: 0.10.0
libtpu: 0.0.40
codegen_flags: <defaults>
</compile_context>

<pallas_src>
import functools

import jax
import jax.numpy as jnp
from jax.experimental import pallas as pl
from jax.experimental.pallas import tpu as pltpu


def _round_up(x, m):
    return (x + m - 1) // m * m


def _cp_kernel(z_ref, w_ref, c_ref, b_ref, o_ref, *, degree, k_pad):
    # z_ref: (TN, d)                 -- tiled over the token axis
    # w_ref: (d, degree*k_pad)       -- resident VMEM, block i == (mask_i*U_i).T, lane-padded
    # c_ref: (k_pad, o_pad)          -- resident VMEM, layer_C weight transposed + padded
    # b_ref: (1, o_pad)              -- resident VMEM, f32 bias (lane-padded)
    # o_ref: (TN, o_pad)
    z = z_ref[...]

    # One fused MXU call covering all `degree` weight blocks.
    t = jnp.dot(z, w_ref[...], preferred_element_type=jnp.float32)  # (TN, degree*k_pad) f32

    # out_1 = T_1 ; out_i = T_i * out + out  (exact PyTorch op order).
    # Slices start at 128-aligned static offsets -> whole-vreg selects.
    out = t[:, :k_pad]
    for i in range(1, degree):
        t_i = t[:, i * k_pad:(i + 1) * k_pad]
        out = t_i * out + out

    # layer_C: lane-dense (o_pad) output, bias added in f32.
    x = jnp.dot(out.astype(c_ref.dtype), c_ref[...],
                preferred_element_type=jnp.float32)
    o_ref[...] = (x + b_ref[...]).astype(o_ref.dtype)


def cp_sparse_degree_forward(z, masked_U, c_weight, c_bias, *,
                             tile_n=512, compute_dtype=None):
    """z: (..., d); masked_U: (degree, k, d) == mask_i*U_i; c_weight: (o, k); c_bias: (o,)."""
    original_shape = z.shape[:-1]
    d = z.shape[-1]
    degree, k, _ = masked_U.shape
    o = c_weight.shape[0]
    out_dtype = z.dtype
    if compute_dtype is None:
        compute_dtype = z.dtype

    z2 = z.reshape(-1, d)
    n = z2.shape[0]

    # Balanced row-tiling: cover n with cdiv(n, tile_n) (nearly) equal tiles,
    # rounded to the 8-sublane granule, so token-padding waste stays below one
    # sublane group per tile.  Prefer >= 2 grid steps when there is enough work
    # so v7x megacore can shard the ("parallel") grid across both TensorCores.
    grid_count = pl.cdiv(max(n, 1), tile_n)
    if grid_count == 1 and n > 256:
        grid_count = 2
    tile_n = _round_up(pl.cdiv(max(n, 1), grid_count), 8)
    n_pad = grid_count * tile_n
    if n_pad != n:
        z2 = jnp.pad(z2, ((0, n_pad - n), (0, 0)))
    z2 = z2.astype(compute_dtype)

    # Lane-dense widths.
    k_pad = _round_up(k, 128)
    o_pad = _round_up(o, 128)

    # Host-side weight prep (one-time): transpose + degree-fuse + lane-pad.
    w_blocks = jnp.transpose(masked_U, (2, 0, 1)).astype(compute_dtype)        # (d, degree, k)
    w_all = jnp.zeros((d, degree, k_pad), dtype=compute_dtype).at[:, :, :k].set(w_blocks)
    w_all = w_all.reshape(d, degree * k_pad)
    c_t = jnp.zeros((k_pad, o_pad), dtype=compute_dtype).at[:k, :o].set(
        c_weight.T.astype(compute_dtype))
    b_row = jnp.zeros((1, o_pad), dtype=jnp.float32).at[0, :o].set(
        c_bias.astype(jnp.float32))

    isz_in = jnp.dtype(compute_dtype).itemsize
    isz_out = jnp.dtype(out_dtype).itemsize
    resident_bytes = (w_all.size + c_t.size) * isz_in + b_row.size * 4
    per_step_bytes = 2 * tile_n * d * isz_in + 2 * tile_n * o_pad * isz_out   # dbl-buffered io
    temp_bytes = tile_n * (degree + 2) * k_pad * 4                            # t + out temporaries
    vmem_bytes = int(min(max(resident_bytes + per_step_bytes + temp_bytes + (4 << 20),
                             32 << 20), 64 << 20))

    flops = 2 * n_pad * d * degree * k_pad + 2 * n_pad * k_pad * o_pad
    bytes_accessed = (n_pad * d * isz_in + n_pad * o_pad * isz_out + resident_bytes)

    out = pl.pallas_call(
        functools.partial(_cp_kernel, degree=degree, k_pad=k_pad),
        out_shape=jax.ShapeDtypeStruct((n_pad, o_pad), out_dtype),
        grid_spec=pltpu.PrefetchScalarGridSpec(
            num_scalar_prefetch=0,
            grid=(grid_count,),
            in_specs=[
                pl.BlockSpec((tile_n, d), lambda i: (i, 0)),           # z tile (pipelined)
                pl.BlockSpec(memory_space=pltpu.MemorySpace.VMEM),     # fused weights (resident)
                pl.BlockSpec(memory_space=pltpu.MemorySpace.VMEM),     # layer_C weight (resident)
                pl.BlockSpec(memory_space=pltpu.MemorySpace.VMEM),     # layer_C bias (resident)
            ],
            out_specs=pl.BlockSpec((tile_n, o_pad), lambda i: (i, 0)),
        ),
        compiler_params=pltpu.CompilerParams(
            dimension_semantics=("parallel",),
            vmem_limit_bytes=vmem_bytes,
        ),
        cost_estimate=pl.CostEstimate(
            flops=flops, transcendentals=0, bytes_accessed=bytes_accessed),
    )(z2, w_all, c_t, b_row)

    return out[:n, :o].reshape(*original_shape, o)


def create_sawtooth_masks(d, k, l_offset=0, u_offset=0):
    """JAX port of _create_sawtooth_masks_efficient."""
    min_dim = min(d, k)
    L_base = jnp.tril(jnp.ones((min_dim, min_dim), jnp.float32), l_offset)
    U_base = jnp.triu(jnp.ones((min_dim, min_dim), jnp.float32), u_offset)
    mask1 = jnp.zeros((k, d), jnp.float32)
    mask2 = jnp.zeros((k, d), jnp.float32)
    if d >= k:
        nb = d // k
        if nb > 0:
            mask1 = mask1.at[:, :k * nb].set(jnp.tile(U_base, (1, nb)))
            mask2 = mask2.at[:, :k * nb].set(jnp.tile(L_base, (1, nb)))
        rem = d % k
        if rem > 0:
            mask1 = mask1.at[:, k * nb:].set(U_base[:, :rem])
            mask2 = mask2.at[:, k * nb:].set(L_base[:, :rem])
    else:
        nb = k // d
        if nb > 0:
            mask1 = mask1.at[:d * nb, :].set(jnp.tile(U_base, (nb, 1)))
            mask2 = mask2.at[:d * nb, :].set(jnp.tile(L_base, (nb, 1)))
        rem = k % d
        if rem > 0:
            mask1 = mask1.at[d * nb:, :].set(U_base[:rem, :])
            mask2 = mask2.at[d * nb:, :].set(L_base[:rem, :])
    return mask1, mask2


def init_params(key, degree, d, k, o, l_offset=0, u_offset=0):
    """Deterministic synthetic init mirroring the PyTorch module shapes."""
    k_mask, k_u, k_cw, k_cb = jax.random.split(key, 4)

    # TODO(synk): ut.generate_masks is external to the spec; use a deterministic
    # binary stand-in. The sawtooth L/U masks below follow the module exactly.
    gen_masks = (jax.random.uniform(k_mask, (degree, k, d)) > 0.5).astype(jnp.float32)
    m1, m2 = create_sawtooth_masks(d, k, l_offset, u_offset)
    # module degree index j (1-based): odd -> mask_1 (U), even -> mask_2 (L)
    saw = jnp.stack([m1 if (i % 2 == 0) else m2 for i in range(degree)])
    masks = gen_masks * saw                                  # binary

    # U_i ~ nn.Linear(d, k, bias=False).weight, mask-multiplied at init;
    # forward re-applies the (binary) mask, so the effective weight is masks*U.
    bound_u = 1.0 / jnp.sqrt(d)
    U = jax.random.uniform(k_u, (degree, k, d), minval=-bound_u, maxval=bound_u)
    masked_U = (masks * U).astype(jnp.float32)

    bound_c = 1.0 / jnp.sqrt(k)
    c_weight = jax.random.uniform(k_cw, (o, k), minval=-bound_c, maxval=bound_c)
    c_bias = jax.random.uniform(k_cb, (o,), minval=-bound_c, maxval=bound_c)
    return masked_U, c_weight.astype(jnp.float32), c_bias.astype(jnp.float32)


def reference_forward(z, masked_U, c_weight, c_bias):
    """Pure-JAX reference matching the PyTorch forward."""
    original_shape = z.shape[:-1]
    d = z.shape[-1]
    z2 = z.reshape(-1, d)
    out = z2 @ masked_U[0].T
    for i in range(1, masked_U.shape[0]):
        out = (z2 @ masked_U[i].T) * out + out
    x = out @ c_weight.T + c_bias
    return x.reshape(*original_shape, c_weight.shape[0])


if __name__ == "__main__":
    degree, d, k, o = 3, 32, 32, 16
    batch, seq = 2, 64          # N = 128 tokens (balanced tile auto-sizes to 128)

    key = jax.random.PRNGKey(0)
    k_x, k_p = jax.random.split(key)
    z = jax.random.normal(k_x, (batch, seq, d), dtype=jnp.float32)
    masked_U, c_weight, c_bias = init_params(k_p, degree, d, k, o)

    ref = reference_forward(z, masked_U, c_weight, c_bias)

    # f32 path: exact module semantics.
    out = cp_sparse_degree_forward(z, masked_U, c_weight, c_bias, tile_n=512)
    out = jax.block_until_ready(out)
    assert out.shape == (batch, seq, o)
    assert jnp.allclose(out, ref, atol=1e-4, rtol=1e-4), \
        float(jnp.max(jnp.abs(out - ref)))

    # bf16 operand feed (v6e/v7x MXU path); accumulation stays f32 in-kernel.
    out_bf16 = cp_sparse_degree_forward(z, masked_U, c_weight, c_bias,
                                        tile_n=512, compute_dtype=jnp.bfloat16)
    out_bf16 = jax.block_until_ready(out_bf16)
    assert jnp.all(jnp.isfinite(out_bf16))
    assert float(jnp.max(jnp.abs(out_bf16 - ref))) < 0.25

    print("KERNEL_OK")
</pallas_src>

<mosaic_0001>
module attributes {stable_mosaic.version = 11 : i64} {
  func.func @_cp_kernel(%arg0: i32, %arg1: memref<128x32xf32, #tpu.memory_space<vmem>>, %arg2: memref<32x384xf32, #tpu.memory_space<vmem>>, %arg3: memref<128x128xf32, #tpu.memory_space<vmem>>, %arg4: memref<1x128xf32, #tpu.memory_space<vmem>>, %arg5: memref<128x128xf32, #tpu.memory_space<vmem>>) attributes {dimension_semantics = [#tpu.dimension_semantics<parallel>], iteration_bounds = array<i64: 1>, scalar_prefetch = 0 : i64, scratch_operands = 0 : i64, tpu.core_type = #tpu.core_type<tc>, window_params = [{transform_indices = @transform_0, window_bounds = array<i64: 128, 32>}, {pipeline_mode = #tpu.pipeline_mode<synchronous>, transform_indices = @transform_1, window_bounds = array<i64: 32, 384>}, {pipeline_mode = #tpu.pipeline_mode<synchronous>, transform_indices = @transform_2, window_bounds = array<i64: 128, 128>}, {pipeline_mode = #tpu.pipeline_mode<synchronous>, transform_indices = @transform_3, window_bounds = array<i64: 1, 128>}, {transform_indices = @transform_4, window_bounds = array<i64: 128, 128>}]} {
    %c0 = arith.constant 0 : index
    %c0_0 = arith.constant 0 : index
    %0 = vector.load %arg1[%c0, %c0_0] : memref<128x32xf32, #tpu.memory_space<vmem>>, vector<128x32xf32>
    %c0_1 = arith.constant 0 : index
    %c0_2 = arith.constant 0 : index
    %1 = vector.load %arg2[%c0_1, %c0_2] : memref<32x384xf32, #tpu.memory_space<vmem>>, vector<32x384xf32>
    %cst = arith.constant dense<0.000000e+00> : vector<128x384xf32>
    %2 = tpu.matmul %0, %1, %cst {dimension_numbers = #tpu.dot_dimension_numbers<[1], [0], [0], [1], [0, 0, 1, 1], [], []>} : vector<128x32xf32>, vector<32x384xf32>, vector<128x384xf32> -> vector<128x384xf32>
    %3 = vector.extract_strided_slice %2 {offsets = [0, 0], sizes = [128, 128], strides = [1, 1]} : vector<128x384xf32> to vector<128x128xf32>
    %4 = vector.extract_strided_slice %2 {offsets = [0, 128], sizes = [128, 128], strides = [1, 1]} : vector<128x384xf32> to vector<128x128xf32>
    %5 = arith.mulf %4, %3 : vector<128x128xf32>
    %6 = arith.addf %5, %3 : vector<128x128xf32>
    %7 = vector.extract_strided_slice %2 {offsets = [0, 256], sizes = [128, 128], strides = [1, 1]} : vector<128x384xf32> to vector<128x128xf32>
    %8 = arith.mulf %7, %6 : vector<128x128xf32>
    %9 = arith.addf %8, %6 : vector<128x128xf32>
    %c0_3 = arith.constant 0 : index
    %c0_4 = arith.constant 0 : index
    %10 = vector.load %arg3[%c0_3, %c0_4] : memref<128x128xf32, #tpu.memory_space<vmem>>, vector<128x128xf32>
    %cst_5 = arith.constant dense<0.000000e+00> : vector<128x128xf32>
    %11 = tpu.matmul %9, %10, %cst_5 {dimension_numbers = #tpu.dot_dimension_numbers<[1], [0], [0], [1], [0, 0, 1, 1], [], []>} : vector<128x128xf32>, vector<128x128xf32>, vector<128x128xf32> -> vector<128x128xf32>
    %c0_6 = arith.constant 0 : index
    %c0_7 = arith.constant 0 : index
    %12 = vector.load %arg4[%c0_6, %c0_7] : memref<1x128xf32, #tpu.memory_space<vmem>>, vector<1x128xf32>
    %13 = vector.broadcast %12 : vector<1x128xf32> to vector<128x128xf32>
    %14 = arith.addf %11, %13 : vector<128x128xf32>
    %c0_8 = arith.constant 0 : index
    %c0_9 = arith.constant 0 : index
    %15 = vector.load %arg5[%c0_8, %c0_9] : memref<128x128xf32, #tpu.memory_space<vmem>>, vector<128x128xf32>
    tpu.vector_store %arg5[%c0_8, %c0_9], %14 {strides = array<i32>} : memref<128x128xf32, #tpu.memory_space<vmem>>, vector<128x128xf32>,
    return
  }
  func.func @transform_0(%arg0: i32) -> (i32, i32) {
    %c0_i32 = arith.constant 0 : i32
    %c0_i32_0 = arith.constant 0 : i32
    return %arg0, %c0_i32 : i32, i32
  }
  func.func @transform_1(%arg0: i32) -> (i32, i32) {
    %c0_i32 = arith.constant 0 : i32
    %c0_i32_0 = arith.constant 0 : i32
    %c0_i32_1 = arith.constant 0 : i32
    return %c0_i32, %c0_i32_0 : i32, i32
  }
  func.func @transform_2(%arg0: i32) -> (i32, i32) {
    %c0_i32 = arith.constant 0 : i32
    %c0_i32_0 = arith.constant 0 : i32
    %c0_i32_1 = arith.constant 0 : i32
    return %c0_i32, %c0_i32_0 : i32, i32
  }
  func.func @transform_3(%arg0: i32) -> (i32, i32) {
    %c0_i32 = arith.constant 0 : i32
    %c0_i32_0 = arith.constant 0 : i32
    %c0_i32_1 = arith.constant 0 : i32
    return %c0_i32, %c0_i32_0 : i32, i32
  }
  func.func @transform_4(%arg0: i32) -> (i32, i32) {
    %c0_i32 = arith.constant 0 : i32
    %c0_i32_0 = arith.constant 0 : i32
    return %arg0, %c0_i32 : i32, i32
  }
}

</mosaic_0001>

<llo_original>
// kernel: tpu_custom_call.1
$region0: #{tpu_custom_call.1}
  #allocation0 [shape = 'u32[]', space=smem, size = 0x4, offset = 0x4, fixed_abs, tag = 'smem constant byte address 0x4 - core index']
  #allocation1 [shape = 'u32[72,128]{1,0:T(1,128)}', space=vmem, size = 0x9000, scoped, tag = 'internal scratch']
  %s0 = inlined_call_operand.vmem [shape: f32[128,32], index: 0, kind: input, shape index: {}]
  %s1 = inlined_call_operand.hbm [shape: f32[32,384], index: 1, kind: input, shape index: {}]
  %s2 = inlined_call_operand.vmem [shape: f32[128,128], index: 2, kind: input, shape index: {}]
  %s3 = inlined_call_operand.vmem [shape: f32[1,128], index: 3, kind: input, shape index: {}]
  %s4 = inlined_call_operand.hbm [shape: f32[128,128], index: 4, kind: output, shape index: {}]
  %s5 = sld [smem:[#allocation0]]
  $region30: #{tpu_custom_call.1} parent=0
    _
  %s7 = ssub.s32 1, %s5
  %s8 = scalar_select 0, %s7, %s5
  $region1: #{tpu_custom_call.1} parent=0
    #allocation2 [shape = 'u8[49152]{0}', space=vmem, size = 0xc000, scoped, tag = 'input window, operand 1, single buffered']
    #allocation3 [shape = 's32[1]{0}', space=sflag, size = 0x4, scoped, tag = 'scoped memory for tpu_custom_call.1']
    #allocation4 [shape = 's32[1]{0}', space=sflag, size = 0x4, scoped, tag = 'scoped memory for tpu_custom_call.1']
    #allocation5 [shape = 'u8[65536]{0}', space=vmem, size = 0x10000, scoped, tag = 'output window, operand 0, single buffered']
    %9 = vsyncpa [#allocation3], 0
    %10 = vsyncpa [#allocation4], 0
    // Predicated region
    $region2: #{tpu_custom_call.1} parent=1 // pred_check
      _
    $region3: #{tpu_custom_call.1} parent=1 // pred_check_branch
      %12 = sbr.rel (0) target = $region5
    $region4: #{tpu_custom_call.1} parent=1 // pred_region
      _
    $region5: #{tpu_custom_call.1} parent=1 // pred_fallthru
      _
    // Predicated region
    $region6: #{tpu_custom_call.1} parent=1 // pred_check
      _
    $region7: #{tpu_custom_call.1} parent=1 // pred_check_branch
      %14 = sbr.rel (0) target = $region9
    $region8: #{tpu_custom_call.1} parent=1 // pred_region
      %16 = vsyncadd [#allocation3], 0
      %s17 = sshll.u32 %s1, 4
      %s18 = int_to_ptr.hbm [resolvable:$true] %s17
      %s19 = sshll.u32 [#allocation2], 4
      %s20 = int_to_ptr.vmem [resolvable:$true] %s19
      %25 = dma.hbm_to_vmem [thread:$0]  %s18, 1536, %s20, [#allocation3], 384, 384, 24
    $region9: #{tpu_custom_call.1} parent=1 // pred_fallthru
      _
    // Predicated region
    $region10: #{tpu_custom_call.1} parent=1 // pred_check
      _
    $region11: #{tpu_custom_call.1} parent=1 // pred_check_branch
      %27 = sbr.rel (0) target = $region13
    $region12: #{tpu_custom_call.1} parent=1 // pred_region
      _
    $region13: #{tpu_custom_call.1} parent=1 // pred_fallthru
      _
    // Predicated region
    $region14: #{tpu_custom_call.1} parent=1 // pred_check
      _
    $region15: #{tpu_custom_call.1} parent=1 // pred_check_branch
      %29 = sbr.rel (0) target = $region17
    $region16: #{tpu_custom_call.1} parent=1 // pred_region
      _
    $region17: #{tpu_custom_call.1} parent=1 // pred_fallthru
      _
    // Predicated region
    $region18: #{tpu_custom_call.1} parent=1 // pred_check
      _
    $region19: #{tpu_custom_call.1} parent=1 // pred_check_branch
      %31 = sbr.rel (0) target = $region21
    $region20: #{tpu_custom_call.1} parent=1 // pred_region
      %33 = dma.done [#allocation3], 1536
    $region21: #{tpu_custom_call.1} parent=1 // pred_fallthru
      _
    %v34 = vld [vmem:[%s0] sm:$0xff]
    %v35 = vld [vmem:[%s0 + $0x8] sm:$0xff]
    %v36 = vld [vmem:[%s0 + $0x10] sm:$0xff]
    %v37 = vld [vmem:[%s0 + $0x18] sm:$0xff]
    %v38 = vld [vmem:[%s0 + $0x20] sm:$0xff]
    %v39 = vld [vmem:[%s0 + $0x28] sm:$0xff]
    %v40 = vld [vmem:[%s0 + $0x30] sm:$0xff]
    %v41 = vld [vmem:[%s0 + $0x38] sm:$0xff]
    %v42 = vld [vmem:[%s0 + $0x40] sm:$0xff]
    %v43 = vld [vmem:[%s0 + $0x48] sm:$0xff]
    %v44 = vld [vmem:[%s0 + $0x50] sm:$0xff]
    %v45 = vld [vmem:[%s0 + $0x58] sm:$0xff]
    %v46 = vld [vmem:[%s0 + $0x60] sm:$0xff]
    %v47 = vld [vmem:[%s0 + $0x68] sm:$0xff]
    %v48 = vld [vmem:[%s0 + $0x70] sm:$0xff]
    %v49 = vld [vmem:[%s0 + $0x78] sm:$0xff]
    %v50 = vld [vmem:[#allocation2] sm:$0xff]
    %v51 = vld [vmem:[#allocation2 + $0x8] sm:$0xff]
    %v52 = vld [vmem:[#allocation2 + $0x10] sm:$0xff]
    %v53 = vld [vmem:[#allocation2 + $0x18] sm:$0xff]
    %v54 = vld [vmem:[#allocation2 + $0x20] sm:$0xff]
    %v55 = vld [vmem:[#allocation2 + $0x28] sm:$0xff]
    %v56 = vld [vmem:[#allocation2 + $0x30] sm:$0xff]
    %v57 = vld [vmem:[#allocation2 + $0x38] sm:$0xff]
    %v58 = vld [vmem:[#allocation2 + $0x40] sm:$0xff]
    %v59 = vld [vmem:[#allocation2 + $0x48] sm:$0xff]
    %v60 = vld [vmem:[#allocation2 + $0x50] sm:$0xff]
    %v61 = vld [vmem:[#allocation2 + $0x58] sm:$0xff]
    %vm62 = vcmask 261120
    %v64 = vsel %vm62, %v34, 0
    %v67 = vsel %vm62, %v35, 0
    %v70 = vsel %vm62, %v36, 0
    %v73 = vsel %vm62, %v37, 0
    %v76 = vsel %vm62, %v38, 0
    %v79 = vsel %vm62, %v39, 0
    %v82 = vsel %vm62, %v40, 0
    %v85 = vsel %vm62, %v41, 0
    %v88 = vsel %vm62, %v42, 0
    %v91 = vsel %vm62, %v43, 0
    %v94 = vsel %vm62, %v44, 0
    %v97 = vsel %vm62, %v45, 0
    %v100 = vsel %vm62, %v46, 0
    %v103 = vsel %vm62, %v47, 0
    %v106 = vsel %vm62, %v48, 0
    %v109 = vsel %vm62, %v49, 0
    %111 = vmatpush.msra.mxu0 0.0
    %112 = vmatpush.msra.mxu0 0.0
    %113 = vmatpush.msra.mxu0 0.0
    %114 = vmatpush.msra.mxu0 0.0
    %115 = vmatpush.msra.mxu0 0.0
    %116 = vmatpush.msra.mxu0 0.0
    %117 = vmatpush.msra.mxu0 0.0
    %118 = vmatpush.msra.mxu0 0.0
    %119 = vmatpush.msra.mxu0 0.0
    %120 = vmatpush.msra.mxu0 0.0
    %121 = vmatpush.msra.mxu0 0.0
    %122 = vmatpush.msra.mxu0 0.0
    %123 = vmatpush.msra.mxu0 %v59
    %124 = vmatpush.msra.mxu0 %v56
    %125 = vmatpush.msra.mxu0 %v53
    %126 = vmatpush.msra.mxu0 %v50
    %127 = vmatmul.f32.gmra.mxu0 %v64
    %v128 = vpop.f32.mrf.mxu0
    %v129 = vadd.f32 0.0, %v128
    %130 = vmatmul.f32.gmra.mxu0 %v67
    %v131 = vpop.f32.mrf.mxu0
    %v132 = vadd.f32 0.0, %v131
    %133 = vmatmul.f32.gmra.mxu0 %v70
    %v134 = vpop.f32.mrf.mxu0
    %v135 = vadd.f32 0.0, %v134
    %136 = vmatmul.f32.gmra.mxu0 %v73
    %v137 = vpop.f32.mrf.mxu0
    %v138 = vadd.f32 0.0, %v137
    %139 = vmatmul.f32.gmra.mxu0 %v76
    %v140 = vpop.f32.mrf.mxu0
    %v141 = vadd.f32 0.0, %v140
    %142 = vmatmul.f32.gmra.mxu0 %v79
    %v143 = vpop.f32.mrf.mxu0
    %v144 = vadd.f32 0.0, %v143
    %145 = vmatmul.f32.gmra.mxu0 %v82
    %v146 = vpop.f32.mrf.mxu0
    %v147 = vadd.f32 0.0, %v146
    %148 = vmatmul.f32.gmra.mxu0 %v85
    %v149 = vpop.f32.mrf.mxu0
    %v150 = vadd.f32 0.0, %v149
    %151 = vmatmul.f32.gmra.mxu0 %v88
    %v152 = vpop.f32.mrf.mxu0
    %v153 = vadd.f32 0.0, %v152
    %154 = vmatmul.f32.gmra.mxu0 %v91
    %v155 = vpop.f32.mrf.mxu0
    %v156 = vadd.f32 0.0, %v155
    %157 = vmatmul.f32.gmra.mxu0 %v94
    %v158 = vpop.f32.mrf.mxu0
    %v159 = vadd.f32 0.0, %v158
    %160 = vmatmul.f32.gmra.mxu0 %v97
    %v161 = vpop.f32.mrf.mxu0
    %v162 = vadd.f32 0.0, %v161
    %163 = vmatmul.f32.gmra.mxu0 %v100
    %v164 = vpop.f32.mrf.mxu0
    %v165 = vadd.f32 0.0, %v164
    %166 = vmatmul.f32.gmra.mxu0 %v103
    %v167 = vpop.f32.mrf.mxu0
    %v168 = vadd.f32 0.0, %v167
    %169 = vmatmul.f32.gmra.mxu0 %v106
    %v170 = vpop.f32.mrf.mxu0
    %v171 = vadd.f32 0.0, %v170
    %172 = vmatmul.f32.gmra.mxu0 %v109
    %v173 = vpop.f32.mrf.mxu0
    %v174 = vadd.f32 0.0, %v173
    %175 = vdwg.mxu0
    %176 = vmatpush.msra.mxu0 0.0
    %177 = vmatpush.msra.mxu0 0.0
    %178 = vmatpush.msra.mxu0 0.0
    %179 = vmatpush.msra.mxu0 0.0
    %180 = vmatpush.msra.mxu0 0.0
    %181 = vmatpush.msra.mxu0 0.0
    %182 = vmatpush.msra.mxu0 0.0
    %183 = vmatpush.msra.mxu0 0.0
    %184 = vmatpush.msra.mxu0 0.0
    %185 = vmatpush.msra.mxu0 0.0
    %186 = vmatpush.msra.mxu0 0.0
    %187 = vmatpush.msra.mxu0 0.0
    %188 = vmatpush.msra.mxu0 %v60
    %189 = vmatpush.msra.mxu0 %v57
    %190 = vmatpush.msra.mxu0 %v54
    %191 = vmatpush.msra.mxu0 %v51
    %192 = vmatmul.f32.gmra.mxu0 %v64
    %v193 = vpop.f32.mrf.mxu0
    %v194 = vadd.f32 0.0, %v193
    %195 = vmatmul.f32.gmra.mxu0 %v67
    %v196 = vpop.f32.mrf.mxu0
    %v197 = vadd.f32 0.0, %v196
    %198 = vmatmul.f32.gmra.mxu0 %v70
    %v199 = vpop.f32.mrf.mxu0
    %v200 = vadd.f32 0.0, %v199
    %201 = vmatmul.f32.gmra.mxu0 %v73
    %v202 = vpop.f32.mrf.mxu0
    %v203 = vadd.f32 0.0, %v202
    %204 = vmatmul.f32.gmra.mxu0 %v76
    %v205 = vpop.f32.mrf.mxu0
    %v206 = vadd.f32 0.0, %v205
    %207 = vmatmul.f32.gmra.mxu0 %v79
    %v208 = vpop.f32.mrf.mxu0
    %v209 = vadd.f32 0.0, %v208
    %210 = vmatmul.f32.gmra.mxu0 %v82
    %v211 = vpop.f32.mrf.mxu0
    %v212 = vadd.f32 0.0, %v211
    %213 = vmatmul.f32.gmra.mxu0 %v85
    %v214 = vpop.f32.mrf.mxu0
    %v215 = vadd.f32 0.0, %v214
    %216 = vmatmul.f32.gmra.mxu0 %v88
    %v217 = vpop.f32.mrf.mxu0
    %v218 = vadd.f32 0.0, %v217
    %219 = vmatmul.f32.gmra.mxu0 %v91
    %v220 = vpop.f32.mrf.mxu0
    %v221 = vadd.f32 0.0, %v220
    %222 = vmatmul.f32.gmra.mxu0 %v94
    %v223 = vpop.f32.mrf.mxu0
    %v224 = vadd.f32 0.0, %v223
    %225 = vmatmul.f32.gmra.mxu0 %v97
    %v226 = vpop.f32.mrf.mxu0
    %v227 = vadd.f32 0.0, %v226
    %228 = vmatmul.f32.gmra.mxu0 %v100
    %v229 = vpop.f32.mrf.mxu0
    %v230 = vadd.f32 0.0, %v229
    %231 = vmatmul.f32.gmra.mxu0 %v103
    %v232 = vpop.f32.mrf.mxu0
    %v233 = vadd.f32 0.0, %v232
    %234 = vmatmul.f32.gmra.mxu0 %v106
    %v235 = vpop.f32.mrf.mxu0
    %v236 = vadd.f32 0.0, %v235
    %237 = vmatmul.f32.gmra.mxu0 %v109
    %v238 = vpop.f32.mrf.mxu0
    %v239 = vadd.f32 0.0, %v238
    %240 = vdwg.mxu0
    %241 = vmatpush.msra.mxu0 0.0
    %242 = vmatpush.msra.mxu0 0.0
    %243 = vmatpush.msra.mxu0 0.0
    %244 = vmatpush.msra.mxu0 0.0
    %245 = vmatpush.msra.mxu0 0.0
    %246 = vmatpush.msra.mxu0 0.0
    %247 = vmatpush.msra.mxu0 0.0
    %248 = vmatpush.msra.mxu0 0.0
    %249 = vmatpush.msra.mxu0 0.0
    %250 = vmatpush.msra.mxu0 0.0
    %251 = vmatpush.msra.mxu0 0.0
    %252 = vmatpush.msra.mxu0 0.0
    %253 = vmatpush.msra.mxu0 %v61
    %254 = vmatpush.msra.mxu0 %v58
    %255 = vmatpush.msra.mxu0 %v55
    %256 = vmatpush.msra.mxu0 %v52
    %257 = vmatmul.f32.gmra.mxu0 %v64
    %v258 = vpop.f32.mrf.mxu0
    %v259 = vadd.f32 0.0, %v258
    %260 = vmatmul.f32.gmra.mxu0 %v67
    %v261 = vpop.f32.mrf.mxu0
    %v262 = vadd.f32 0.0, %v261
    %263 = vmatmul.f32.gmra.mxu0 %v70
    %v264 = vpop.f32.mrf.mxu0
    %v265 = vadd.f32 0.0, %v264
    %266 = vmatmul.f32.gmra.mxu0 %v73
    %v267 = vpop.f32.mrf.mxu0
    %v268 = vadd.f32 0.0, %v267
    %269 = vmatmul.f32.gmra.mxu0 %v76
    %v270 = vpop.f32.mrf.mxu0
    %v271 = vadd.f32 0.0, %v270
    %272 = vmatmul.f32.gmra.mxu0 %v79
    %v273 = vpop.f32.mrf.mxu0
    %v274 = vadd.f32 0.0, %v273
    %275 = vmatmul.f32.gmra.mxu0 %v82
    %v276 = vpop.f32.mrf.mxu0
    %v277 = vadd.f32 0.0, %v276
    %278 = vmatmul.f32.gmra.mxu0 %v85
    %v279 = vpop.f32.mrf.mxu0
    %v280 = vadd.f32 0.0, %v279
    %281 = vmatmul.f32.gmra.mxu0 %v88
    %v282 = vpop.f32.mrf.mxu0
    %v283 = vadd.f32 0.0, %v282
    %284 = vmatmul.f32.gmra.mxu0 %v91
    %v285 = vpop.f32.mrf.mxu0
    %v286 = vadd.f32 0.0, %v285
    %287 = vmatmul.f32.gmra.mxu0 %v94
    %v288 = vpop.f32.mrf.mxu0
    %v289 = vadd.f32 0.0, %v288
    %290 = vmatmul.f32.gmra.mxu0 %v97
    %v291 = vpop.f32.mrf.mxu0
    %v292 = vadd.f32 0.0, %v291
    %293 = vmatmul.f32.gmra.mxu0 %v100
    %v294 = vpop.f32.mrf.mxu0
    %v295 = vadd.f32 0.0, %v294
    %296 = vmatmul.f32.gmra.mxu0 %v103
    %v297 = vpop.f32.mrf.mxu0
    %v298 = vadd.f32 0.0, %v297
    %299 = vmatmul.f32.gmra.mxu0 %v106
    %v300 = vpop.f32.mrf.mxu0
    %v301 = vadd.f32 0.0, %v300
    %302 = vmatmul.f32.gmra.mxu0 %v109
    %v303 = vpop.f32.mrf.mxu0
    %v304 = vadd.f32 0.0, %v303
    %305 = vdwg.mxu0
    %v306 = vmul.f32 %v194, %v129
    %v307 = vmul.f32 %v197, %v132
    %v308 = vmul.f32 %v200, %v135
    %v309 = vmul.f32 %v203, %v138
    %v310 = vmul.f32 %v206, %v141
    %v311 = vmul.f32 %v209, %v144
    %v312 = vmul.f32 %v212, %v147
    %v313 = vmul.f32 %v215, %v150
    %v314 = vmul.f32 %v218, %v153
    %v315 = vmul.f32 %v221, %v156
    %v316 = vmul.f32 %v224, %v159
    %v317 = vmul.f32 %v227, %v162
    %v318 = vmul.f32 %v230, %v165
    %v319 = vmul.f32 %v233, %v168
    %v320 = vmul.f32 %v236, %v171
    %v321 = vmul.f32 %v239, %v174
    %v322 = vadd.f32 %v306, %v129
    %v323 = vadd.f32 %v307, %v132
    %v324 = vadd.f32 %v308, %v135
    %v325 = vadd.f32 %v309, %v138
    %v326 = vadd.f32 %v310, %v141
    %v327 = vadd.f32 %v311, %v144
    %v328 = vadd.f32 %v312, %v147
    %v329 = vadd.f32 %v313, %v150
    %v330 = vadd.f32 %v314, %v153
    %v331 = vadd.f32 %v315, %v156
    %v332 = vadd.f32 %v316, %v159
    %v333 = vadd.f32 %v317, %v162
    %v334 = vadd.f32 %v318, %v165
    %v335 = vadd.f32 %v319, %v168
    %v336 = vadd.f32 %v320, %v171
    %v337 = vadd.f32 %v321, %v174
    %v338 = vmul.f32 %v259, %v322
    %v339 = vmul.f32 %v262, %v323
    %v340 = vmul.f32 %v265, %v324
    %v341 = vmul.f32 %v268, %v325
    %v342 = vmul.f32 %v271, %v326
    %v343 = vmul.f32 %v274, %v327
    %v344 = vmul.f32 %v277, %v328
    %v345 = vmul.f32 %v280, %v329
    %v346 = vmul.f32 %v283, %v330
    %v347 = vmul.f32 %v286, %v331
    %v348 = vmul.f32 %v289, %v332
    %v349 = vmul.f32 %v292, %v333
    %v350 = vmul.f32 %v295, %v334
    %v351 = vmul.f32 %v298, %v335
    %v352 = vmul.f32 %v301, %v336
    %v353 = vmul.f32 %v304, %v337
    %v354 = vadd.f32 %v338, %v322
    %v355 = vadd.f32 %v339, %v323
    %v356 = vadd.f32 %v340, %v324
    %v357 = vadd.f32 %v341, %v325
    %v358 = vadd.f32 %v342, %v326
    %v359 = vadd.f32 %v343, %v327
    %v360 = vadd.f32 %v344, %v328
    %v361 = vadd.f32 %v345, %v329
    %v362 = vadd.f32 %v346, %v330
    %v363 = vadd.f32 %v347, %v331
    %v364 = vadd.f32 %v348, %v332
    %v365 = vadd.f32 %v349, %v333
    %v366 = vadd.f32 %v350, %v334
    %v367 = vadd.f32 %v351, %v335
    %v368 = vadd.f32 %v352, %v336
    %v369 = vadd.f32 %v353, %v337
    %v370 = vld [vmem:[%s2] sm:$0xff]
    %v371 = vld [vmem:[%s2 + $0x8] sm:$0xff]
    %v372 = vld [vmem:[%s2 + $0x10] sm:$0xff]
    %v373 = vld [vmem:[%s2 + $0x18] sm:$0xff]
    %v374 = vld [vmem:[%s2 + $0x20] sm:$0xff]
    %v375 = vld [vmem:[%s2 + $0x28] sm:$0xff]
    %v376 = vld [vmem:[%s2 + $0x30] sm:$0xff]
    %v377 = vld [vmem:[%s2 + $0x38] sm:$0xff]
    %v378 = vld [vmem:[%s2 + $0x40] sm:$0xff]
    %v379 = vld [vmem:[%s2 + $0x48] sm:$0xff]
    %v380 = vld [vmem:[%s2 + $0x50] sm:$0xff]
    %v381 = vld [vmem:[%s2 + $0x58] sm:$0xff]
    %v382 = vld [vmem:[%s2 + $0x60] sm:$0xff]
    %v383 = vld [vmem:[%s2 + $0x68] sm:$0xff]
    %v384 = vld [vmem:[%s2 + $0x70] sm:$0xff]
    %v385 = vld [vmem:[%s2 + $0x78] sm:$0xff]
    %v386 = vld [vmem:[%s3] sm:$0x1]
    %v388 = vperm.slane %v386, 0
    %390 = vmatpush.msra.mxu0 %v385
    %391 = vmatpush.msra.mxu0 %v384
    %392 = vmatpush.msra.mxu0 %v383
    %393 = vmatpush.msra.mxu0 %v382
    %394 = vmatpush.msra.mxu0 %v381
    %395 = vmatpush.msra.mxu0 %v380
    %396 = vmatpush.msra.mxu0 %v379
    %397 = vmatpush.msra.mxu0 %v378
    %398 = vmatpush.msra.mxu0 %v377
    %399 = vmatpush.msra.mxu0 %v376
    %400 = vmatpush.msra.mxu0 %v375
    %401 = vmatpush.msra.mxu0 %v374
    %402 = vmatpush.msra.mxu0 %v373
    %403 = vmatpush.msra.mxu0 %v372
    %404 = vmatpush.msra.mxu0 %v371
    %405 = vmatpush.msra.mxu0 %v370
    %406 = vmatmul.f32.gmra.mxu0 %v354
    %v407 = vpop.f32.mrf.mxu0
    %v408 = vadd.f32 %v388, %v407
    %409 = vmatmul.f32.gmra.mxu0 %v355
    %v410 = vpop.f32.mrf.mxu0
    %v411 = vadd.f32 %v388, %v410
    %412 = vmatmul.f32.gmra.mxu0 %v356
    %v413 = vpop.f32.mrf.mxu0
    %v414 = vadd.f32 %v388, %v413
    %415 = vmatmul.f32.gmra.mxu0 %v357
    %v416 = vpop.f32.mrf.mxu0
    %v417 = vadd.f32 %v388, %v416
    %418 = vmatmul.f32.gmra.mxu0 %v358
    %v419 = vpop.f32.mrf.mxu0
    %v420 = vadd.f32 %v388, %v419
    %421 = vmatmul.f32.gmra.mxu0 %v359
    %v422 = vpop.f32.mrf.mxu0
    %v423 = vadd.f32 %v388, %v422
    %424 = vmatmul.f32.gmra.mxu0 %v360
    %v425 = vpop.f32.mrf.mxu0
    %v426 = vadd.f32 %v388, %v425
    %427 = vmatmul.f32.gmra.mxu0 %v361
    %v428 = vpop.f32.mrf.mxu0
    %v429 = vadd.f32 %v388, %v428
    %430 = vmatmul.f32.gmra.mxu0 %v362
    %v431 = vpop.f32.mrf.mxu0
    %v432 = vadd.f32 %v388, %v431
    %433 = vmatmul.f32.gmra.mxu0 %v363
    %v434 = vpop.f32.mrf.mxu0
    %v435 = vadd.f32 %v388, %v434
    %436 = vmatmul.f32.gmra.mxu0 %v364
    %v437 = vpop.f32.mrf.mxu0
    %v438 = vadd.f32 %v388, %v437
    %439 = vmatmul.f32.gmra.mxu0 %v365
    %v440 = vpop.f32.mrf.mxu0
    %v441 = vadd.f32 %v388, %v440
    %442 = vmatmul.f32.gmra.mxu0 %v366
    %v443 = vpop.f32.mrf.mxu0
    %v444 = vadd.f32 %v388, %v443
    %445 = vmatmul.f32.gmra.mxu0 %v367
    %v446 = vpop.f32.mrf.mxu0
    %v447 = vadd.f32 %v388, %v446
    %448 = vmatmul.f32.gmra.mxu0 %v368
    %v449 = vpop.f32.mrf.mxu0
    %v450 = vadd.f32 %v388, %v449
    %451 = vmatmul.f32.gmra.mxu0 %v369
    %v452 = vpop.f32.mrf.mxu0
    %v453 = vadd.f32 %v388, %v452
    %454 = vdwg.mxu0
    %455 = vst [vmem:[#allocation5] sm:$0xff] %v408
    %456 = vst [vmem:[#allocation5 + $0x8] sm:$0xff] %v411
    %457 = vst [vmem:[#allocation5 + $0x10] sm:$0xff] %v414
    %458 = vst [vmem:[#allocation5 + $0x18] sm:$0xff] %v417
    %459 = vst [vmem:[#allocation5 + $0x20] sm:$0xff] %v420
    %460 = vst [vmem:[#allocation5 + $0x28] sm:$0xff] %v423
    %461 = vst [vmem:[#allocation5 + $0x30] sm:$0xff] %v426
    %462 = vst [vmem:[#allocation5 + $0x38] sm:$0xff] %v429
    %463 = vst [vmem:[#allocation5 + $0x40] sm:$0xff] %v432
    %464 = vst [vmem:[#allocation5 + $0x48] sm:$0xff] %v435
    %465 = vst [vmem:[#allocation5 + $0x50] sm:$0xff] %v438
    %466 = vst [vmem:[#allocation5 + $0x58] sm:$0xff] %v441
    %467 = vst [vmem:[#allocation5 + $0x60] sm:$0xff] %v444
    %468 = vst [vmem:[#allocation5 + $0x68] sm:$0xff] %v447
    %469 = vst [vmem:[#allocation5 + $0x70] sm:$0xff] %v450
    %470 = vst [vmem:[#allocation5 + $0x78] sm:$0xff] %v453
    // Predicated region
    $region22: #{tpu_custom_call.1} parent=1 // pred_check
      _
    $region23: #{tpu_custom_call.1} parent=1 // pred_check_branch
      %472 = sbr.rel (0) target = $region25
    $region24: #{tpu_custom_call.1} parent=1 // pred_region
      %474 = vsyncadd [#allocation4], 0
      %s475 = sshll.u32 [#allocation5], 4
      %s476 = int_to_ptr.vmem [resolvable:$true] %s475
      %s477 = sshll.u32 %s4, 4
      %s478 = int_to_ptr.hbm [resolvable:$true] %s477
      %483 = dma.vmem_to_hbm [thread:$0]  %s476, 2048, %s478, [#allocation4], 128, 128, 8
    $region25: #{tpu_custom_call.1} parent=1 // pred_fallthru
      _
    // Predicated region
    $region26: #{tpu_custom_call.1} parent=1 // pred_check
      _
    $region27: #{tpu_custom_call.1} parent=1 // pred_check_branch
      %485 = sbr.rel (0) target = $region29
    $region28: #{tpu_custom_call.1} parent=1 // pred_region
      %487 = dma.done [#allocation4], 2048
    $region29: #{tpu_custom_call.1} parent=1 // pred_fallthru
      _
    %488 = vsyncpa [#allocation3], 1
    %489 = vsyncpa [#allocation4], 1

</llo_original>
